<compile_context>
chip_gen: v7x
topology: tpu7x:2x2x1
jax: 0.10.0
libtpu: 0.0.40
codegen_flags: <defaults>
</compile_context>

<pallas_src>
import functools

import jax
import jax.numpy as jnp
from jax.experimental import pallas as pl
from jax.experimental.pallas import tpu as pltpu

HIDDEN = 64       # true hidden width of fc1/fc2
KPAD = 8          # rows reserved for fc1 in the packed weight slab
LANES = 128       # lane width used for the hidden layers inside the kernel
OUT_LANES = 8     # action_size (4) padded to 8 -> narrow output writeback
W_ROWS = KPAD + LANES + LANES   # packed weight slab rows (8 + 128 + 128 = 264)
B_ROWS = 8                      # packed bias slab rows (3 used, padded to 8)


def qnetwork_kernel(x_ref, w_ref, b_ref, o_ref, *, state_size):
    # x_ref: [TB, state_size] f32   (streamed over the batch grid)
    # w_ref: [W_ROWS, 128]    bf16  (packed w1|w2|w3, zero padded, resident)
    # b_ref: [B_ROWS, 128]    f32   (b1|b2|b3, zero padded, resident)
    # o_ref: [TB, OUT_LANES]  f32
    x = x_ref[...].astype(jnp.bfloat16)   # cheap VPU cast; HBM x stream stays f32

    # Static, aligned slices into the packed slabs.
    w1 = w_ref[0:state_size, :]                              # [S, 128]
    w2 = w_ref[KPAD:KPAD + LANES, :]                         # [128, 128]
    w3 = w_ref[KPAD + LANES:KPAD + 2 * LANES, 0:OUT_LANES]   # [128, 8]
    b1 = b_ref[0:1, :]                                       # [1, 128]
    b2 = b_ref[1:2, :]                                       # [1, 128]
    b3 = b_ref[2:3, 0:OUT_LANES]                             # [1, 8]

    # fc1 + relu (padded hidden lanes stay exactly 0: zero weights + zero bias)
    h1 = jnp.maximum(jnp.dot(x, w1, preferred_element_type=jnp.float32) + b1, 0.0)
    # fc2 + relu
    h2 = jnp.maximum(
        jnp.dot(h1.astype(jnp.bfloat16), w2,
                preferred_element_type=jnp.float32) + b2, 0.0)
    # fc3 (no activation) -> narrow [TB, 8] store (logits live in lanes [:4])
    o_ref[...] = (jnp.dot(h2.astype(jnp.bfloat16), w3,
                          preferred_element_type=jnp.float32)
                  + b3).astype(o_ref.dtype)


def _round_up(n, m):
    return ((n + m - 1) // m) * m


def _choose_batch_tile(batch, max_batch_tile):
    cap = max(8, (max_batch_tile // 8) * 8)
    b8 = _round_up(batch, 8)
    tb = min(cap, b8)
    # v7x megacore: once the batch is large, keep >= 2 parallel grid steps so
    # both TensorCores get work and input DMA overlaps output writeback.
    if tb == b8 and b8 >= 2048:
        tb = _round_up((b8 + 1) // 2, 8)
    return tb


def pack_params(params):
    """Pack (w1,b1,w2,b2,w3,b3) into one bf16 weight slab + one f32 bias slab.

    Do this ONCE and reuse the slabs across forward calls: per-call DMAs are
    then just x, one weight slab (66 KiB) and one bias slab (4 KiB).
    """
    w1, b1, w2, b2, w3, b3 = params
    state_size = w1.shape[0]
    action_size = w3.shape[1]
    assert state_size <= KPAD and action_size <= OUT_LANES
    assert w1.shape == (state_size, HIDDEN)
    assert w2.shape == (HIDDEN, HIDDEN)
    assert w3.shape == (HIDDEN, action_size)

    w_slab = jnp.zeros((W_ROWS, LANES), jnp.float32)
    w_slab = w_slab.at[:state_size, :HIDDEN].set(w1.astype(jnp.float32))
    w_slab = w_slab.at[KPAD:KPAD + HIDDEN, :HIDDEN].set(w2.astype(jnp.float32))
    w_slab = w_slab.at[KPAD + LANES:KPAD + LANES + HIDDEN, :action_size].set(
        w3.astype(jnp.float32))
    w_slab = w_slab.astype(jnp.bfloat16)   # cast once; MXU runs at native bf16 rate

    b_slab = jnp.zeros((B_ROWS, LANES), jnp.float32)
    b_slab = b_slab.at[0, :HIDDEN].set(b1.reshape(-1).astype(jnp.float32))
    b_slab = b_slab.at[1, :HIDDEN].set(b2.reshape(-1).astype(jnp.float32))
    b_slab = b_slab.at[2, :action_size].set(b3.reshape(-1).astype(jnp.float32))
    return w_slab, b_slab, state_size, action_size


def qnetwork_forward(x, packed, *, max_batch_tile=4096):
    """x: [B, state_size] float32. Returns [B, action_size] float32."""
    w_slab, b_slab, state_size, action_size = packed
    batch = x.shape[0]
    assert x.shape[1] == state_size
    x = x.astype(jnp.float32)   # no-op if already f32

    tb = _choose_batch_tile(batch, max_batch_tile)
    grid = (pl.cdiv(batch, tb),)   # partial final block handled by Pallas masking

    kernel = functools.partial(qnetwork_kernel, state_size=state_size)
    out = pl.pallas_call(
        kernel,
        out_shape=jax.ShapeDtypeStruct((batch, OUT_LANES), jnp.float32),
        grid=grid,
        in_specs=[
            # activations: streamed / double-buffered over the batch grid
            pl.BlockSpec((tb, state_size), lambda i: (i, 0)),
            # packed weights & biases: constant index_map -> fetched once, resident
            pl.BlockSpec((W_ROWS, LANES), lambda i: (0, 0)),
            pl.BlockSpec((B_ROWS, LANES), lambda i: (0, 0)),
        ],
        out_specs=pl.BlockSpec((tb, OUT_LANES), lambda i: (i, 0)),
        compiler_params=pltpu.CompilerParams(
            dimension_semantics=("parallel",)),  # shard batch grid across TCs (v7x)
    )(x, w_slab, b_slab)

    # Narrow (8-lane) output; slice back to the real logits. Cheap now.
    return out[:, :action_size]


def init_params(key, state_size, action_size):
    """PyTorch nn.Linear default init: uniform(-1/sqrt(fan_in), 1/sqrt(fan_in))."""
    def linear(key, fan_in, fan_out):
        kw, kb = jax.random.split(key)
        bound = 1.0 / jnp.sqrt(jnp.float32(fan_in))
        w = jax.random.uniform(kw, (fan_in, fan_out), jnp.float32, -bound, bound)
        b = jax.random.uniform(kb, (1, fan_out), jnp.float32, -bound, bound)
        return w, b

    k1, k2, k3 = jax.random.split(key, 3)
    w1, b1 = linear(k1, state_size, HIDDEN)
    w2, b2 = linear(k2, HIDDEN, HIDDEN)
    w3, b3 = linear(k3, HIDDEN, action_size)
    return (w1, b1, w2, b2, w3, b3)


def qnetwork_reference_f32(x, params):
    w1, b1, w2, b2, w3, b3 = params
    h1 = jnp.maximum(x @ w1 + b1, 0.0)
    h2 = jnp.maximum(h1 @ w2 + b2, 0.0)
    return h2 @ w3 + b3


def qnetwork_reference_bf16(x, params):
    """Mirrors the kernel's numerics: bf16 operands, f32 accumulation, f32 bias."""
    w1, b1, w2, b2, w3, b3 = params
    bf = lambda a: a.astype(jnp.bfloat16)
    h1 = jnp.maximum(
        jnp.dot(bf(x), bf(w1), preferred_element_type=jnp.float32) + b1, 0.0)
    h2 = jnp.maximum(
        jnp.dot(bf(h1), bf(w2), preferred_element_type=jnp.float32) + b2, 0.0)
    return jnp.dot(bf(h2), bf(w3), preferred_element_type=jnp.float32) + b3


if __name__ == "__main__":
    state_size = 3
    action_size = 4

    key = jax.random.PRNGKey(0)
    kx, kp = jax.random.split(key)
    params = init_params(kp, state_size, action_size)
    packed = pack_params(params)   # pack once, reuse across calls

    # Small batch (single grid step).
    x = jax.random.normal(kx, (8, state_size), jnp.float32)
    out = jax.block_until_ready(qnetwork_forward(x, packed))
    assert out.shape == (8, action_size)
    assert jnp.allclose(out, qnetwork_reference_bf16(x, params), atol=1e-3, rtol=1e-3)
    # loose sanity check against full-f32 torch semantics (bf16 weight drift only)
    assert jnp.allclose(out, qnetwork_reference_f32(x, params), atol=2.5e-1, rtol=5e-2)

    # Batch not a multiple of 8 (partial block, no wrapper padding).
    x2 = jax.random.normal(jax.random.PRNGKey(1), (5, state_size), jnp.float32)
    out2 = jax.block_until_ready(qnetwork_forward(x2, packed))
    assert out2.shape == (5, action_size)
    assert jnp.allclose(out2, qnetwork_reference_bf16(x2, params), atol=1e-3, rtol=1e-3)

    # Multi-step grid with a partial final block (exercises boundary masking).
    x3 = jax.random.normal(jax.random.PRNGKey(2), (200, state_size), jnp.float32)
    out3 = jax.block_until_ready(qnetwork_forward(x3, packed, max_batch_tile=64))
    assert out3.shape == (200, action_size)
    assert jnp.allclose(out3, qnetwork_reference_bf16(x3, params), atol=1e-3, rtol=1e-3)

    print("KERNEL_OK")
</pallas_src>

<mosaic_0001>
module attributes {stable_mosaic.version = 11 : i64} {
  func.func @qnetwork_kernel(%arg0: i32, %arg1: memref<8x3xf32, #tpu.memory_space<vmem>>, %arg2: memref<264x128xbf16, #tpu.memory_space<vmem>>, %arg3: memref<8x128xf32, #tpu.memory_space<vmem>>, %arg4: memref<8x8xf32, #tpu.memory_space<vmem>>) attributes {dimension_semantics = [#tpu.dimension_semantics<parallel>], iteration_bounds = array<i64: 1>, scalar_prefetch = 0 : i64, scratch_operands = 0 : i64, tpu.core_type = #tpu.core_type<tc>, window_params = [{transform_indices = @transform_0, window_bounds = array<i64: 8, 3>}, {pipeline_mode = #tpu.pipeline_mode<synchronous>, transform_indices = @transform_1, window_bounds = array<i64: 264, 128>}, {pipeline_mode = #tpu.pipeline_mode<synchronous>, transform_indices = @transform_2, window_bounds = array<i64: 8, 128>}, {transform_indices = @transform_3, window_bounds = array<i64: 8, 8>}]} {
    %c0 = arith.constant 0 : index
    %c0_0 = arith.constant 0 : index
    %0 = vector.load %arg1[%c0, %c0_0] : memref<8x3xf32, #tpu.memory_space<vmem>>, vector<8x3xf32>
    %1 = arith.truncf %0 : vector<8x3xf32> to vector<8x3xbf16>
    %c0_1 = arith.constant 0 : index
    %c0_2 = arith.constant 0 : index
    %2 = vector.load %arg2[%c0_1, %c0_2] : memref<264x128xbf16, #tpu.memory_space<vmem>>, vector<3x128xbf16>
    %c8 = arith.constant 8 : index
    %c0_3 = arith.constant 0 : index
    %3 = vector.load %arg2[%c8, %c0_3] : memref<264x128xbf16, #tpu.memory_space<vmem>>, vector<128x128xbf16>
    %c136 = arith.constant 136 : index
    %c0_4 = arith.constant 0 : index
    %4 = vector.load %arg2[%c136, %c0_4] : memref<264x128xbf16, #tpu.memory_space<vmem>>, vector<128x8xbf16>
    %c0_5 = arith.constant 0 : index
    %c0_6 = arith.constant 0 : index
    %5 = vector.load %arg3[%c0_5, %c0_6] : memref<8x128xf32, #tpu.memory_space<vmem>>, vector<1x128xf32>
    %c1 = arith.constant 1 : index
    %c0_7 = arith.constant 0 : index
    %6 = vector.load %arg3[%c1, %c0_7] : memref<8x128xf32, #tpu.memory_space<vmem>>, vector<1x128xf32>
    %c2 = arith.constant 2 : index
    %c0_8 = arith.constant 0 : index
    %7 = vector.load %arg3[%c2, %c0_8] : memref<8x128xf32, #tpu.memory_space<vmem>>, vector<1x8xf32>
    %cst = arith.constant dense<0.000000e+00> : vector<8x128xf32>
    %8 = tpu.matmul %1, %2, %cst {dimension_numbers = #tpu.dot_dimension_numbers<[1], [0], [0], [1], [0, 0, 1, 1], [], []>} : vector<8x3xbf16>, vector<3x128xbf16>, vector<8x128xf32> -> vector<8x128xf32>
    %9 = vector.broadcast %5 : vector<1x128xf32> to vector<8x128xf32>
    %10 = arith.addf %8, %9 : vector<8x128xf32>
    %cst_9 = arith.constant 0.000000e+00 : f32
    %11 = vector.broadcast %cst_9 : f32 to vector<8x128xf32>
    %12 = arith.maximumf %10, %11 : vector<8x128xf32>
    %13 = arith.truncf %12 : vector<8x128xf32> to vector<8x128xbf16>
    %cst_10 = arith.constant dense<0.000000e+00> : vector<8x128xf32>
    %14 = tpu.matmul %13, %3, %cst_10 {dimension_numbers = #tpu.dot_dimension_numbers<[1], [0], [0], [1], [0, 0, 1, 1], [], []>} : vector<8x128xbf16>, vector<128x128xbf16>, vector<8x128xf32> -> vector<8x128xf32>
    %15 = vector.broadcast %6 : vector<1x128xf32> to vector<8x128xf32>
    %16 = arith.addf %14, %15 : vector<8x128xf32>
    %cst_11 = arith.constant 0.000000e+00 : f32
    %17 = vector.broadcast %cst_11 : f32 to vector<8x128xf32>
    %18 = arith.maximumf %16, %17 : vector<8x128xf32>
    %19 = arith.truncf %18 : vector<8x128xf32> to vector<8x128xbf16>
    %cst_12 = arith.constant dense<0.000000e+00> : vector<8x8xf32>
    %20 = tpu.matmul %19, %4, %cst_12 {dimension_numbers = #tpu.dot_dimension_numbers<[1], [0], [0], [1], [0, 0, 1, 1], [], []>} : vector<8x128xbf16>, vector<128x8xbf16>, vector<8x8xf32> -> vector<8x8xf32>
    %21 = vector.broadcast %7 : vector<1x8xf32> to vector<8x8xf32>
    %22 = arith.addf %20, %21 : vector<8x8xf32>
    %c0_13 = arith.constant 0 : index
    %c0_14 = arith.constant 0 : index
    %23 = vector.load %arg4[%c0_13, %c0_14] : memref<8x8xf32, #tpu.memory_space<vmem>>, vector<8x8xf32>
    tpu.vector_store %arg4[%c0_13, %c0_14], %22 {strides = array<i32>} : memref<8x8xf32, #tpu.memory_space<vmem>>, vector<8x8xf32>,
    return
  }
  func.func @transform_0(%arg0: i32) -> (i32, i32) {
    %c0_i32 = arith.constant 0 : i32
    %c0_i32_0 = arith.constant 0 : i32
    return %arg0, %c0_i32 : i32, i32
  }
  func.func @transform_1(%arg0: i32) -> (i32, i32) {
    %c0_i32 = arith.constant 0 : i32
    %c0_i32_0 = arith.constant 0 : i32
    %c0_i32_1 = arith.constant 0 : i32
    return %c0_i32, %c0_i32_0 : i32, i32
  }
  func.func @transform_2(%arg0: i32) -> (i32, i32) {
    %c0_i32 = arith.constant 0 : i32
    %c0_i32_0 = arith.constant 0 : i32
    %c0_i32_1 = arith.constant 0 : i32
    return %c0_i32, %c0_i32_0 : i32, i32
  }
  func.func @transform_3(%arg0: i32) -> (i32, i32) {
    %c0_i32 = arith.constant 0 : i32
    %c0_i32_0 = arith.constant 0 : i32
    return %arg0, %c0_i32 : i32, i32
  }
}

</mosaic_0001>

<llo_original>
// kernel: tpu_custom_call.1
$region0: #{tpu_custom_call.1}
  #allocation0 [shape = 'u32[]', space=smem, size = 0x4, offset = 0x4, fixed_abs, tag = 'smem constant byte address 0x4 - core index']
  #allocation1 [shape = 'u32[144,128]{1,0:T(1,128)}', space=vmem, size = 0x12000, scoped, tag = 'internal scratch']
  %s0 = inlined_call_operand.vmem [shape: f32[8,3], index: 0, kind: input, shape index: {}]
  %s1 = inlined_call_operand.hbm [shape: bf16[264,128], index: 1, kind: input, shape index: {}]
  %s2 = inlined_call_operand.vmem [shape: f32[8,128], index: 2, kind: input, shape index: {}]
  %s3 = inlined_call_operand.hbm [shape: f32[8,8], index: 3, kind: output, shape index: {}]
  %s4 = sld [smem:[#allocation0]]
  $region26: #{tpu_custom_call.1} parent=0
    _
  %s6 = ssub.s32 1, %s4
  %s7 = scalar_select 0, %s6, %s4
  $region1: #{tpu_custom_call.1} parent=0
    #allocation2 [shape = 'u8[67584]{0}', space=vmem, size = 0x10800, scoped, tag = 'input window, operand 1, single buffered']
    #allocation3 [shape = 's32[1]{0}', space=sflag, size = 0x4, scoped, tag = 'scoped memory for tpu_custom_call.1']
    #allocation4 [shape = 's32[1]{0}', space=sflag, size = 0x4, scoped, tag = 'scoped memory for tpu_custom_call.1']
    #allocation5 [shape = 'u8[4096]{0}', space=vmem, size = 0x1000, scoped, tag = 'output window, operand 0, single buffered']
    %8 = vsyncpa [#allocation3], 0
    %9 = vsyncpa [#allocation4], 0
    // Predicated region
    $region2: #{tpu_custom_call.1} parent=1 // pred_check
      _
    $region3: #{tpu_custom_call.1} parent=1 // pred_check_branch
      %11 = sbr.rel (0) target = $region5
    $region4: #{tpu_custom_call.1} parent=1 // pred_region
      _
    $region5: #{tpu_custom_call.1} parent=1 // pred_fallthru
      _
    // Predicated region
    $region6: #{tpu_custom_call.1} parent=1 // pred_check
      _
    $region7: #{tpu_custom_call.1} parent=1 // pred_check_branch
      %13 = sbr.rel (0) target = $region9
    $region8: #{tpu_custom_call.1} parent=1 // pred_region
      %s15 = ssub.s32 2112, 2112
      %16 = vsyncadd [#allocation3], %s15
      %s17 = sshll.u32 [#allocation2], 4
      %s18 = int_to_ptr.vmem [resolvable:$true] %s17
      %23 = dma.hbm_to_vmem [thread:$0]  %s1, 2112, %s18, [#allocation3], 64, 64, 4
    $region9: #{tpu_custom_call.1} parent=1 // pred_fallthru
      _
    // Predicated region
    $region10: #{tpu_custom_call.1} parent=1 // pred_check
      _
    $region11: #{tpu_custom_call.1} parent=1 // pred_check_branch
      %25 = sbr.rel (0) target = $region13
    $region12: #{tpu_custom_call.1} parent=1 // pred_region
      _
    $region13: #{tpu_custom_call.1} parent=1 // pred_fallthru
      _
    // Predicated region
    $region14: #{tpu_custom_call.1} parent=1 // pred_check
      _
    $region15: #{tpu_custom_call.1} parent=1 // pred_check_branch
      %27 = sbr.rel (0) target = $region17
    $region16: #{tpu_custom_call.1} parent=1 // pred_region
      %28 = dma.done [#allocation3], 2112
    $region17: #{tpu_custom_call.1} parent=1 // pred_fallthru
      _
    %v30 = vld [vmem:[%s0] sm:$0xff]
    %v31 = vpack.c.bf16 %v30, %v30
    %v32 = vld [vmem:[#allocation2] sm:$0x3]
    %v33 = vld [vmem:[#allocation2 + $0x4] sm:$0xf]
    %v34 = vld [vmem:[#allocation2 + $0x8] sm:$0xf]
    %v35 = vld [vmem:[#allocation2 + $0xc] sm:$0xf]
    %v36 = vld [vmem:[#allocation2 + $0x10] sm:$0xf]
    %v37 = vld [vmem:[#allocation2 + $0x14] sm:$0xf]
    %v38 = vld [vmem:[#allocation2 + $0x18] sm:$0xf]
    %v39 = vld [vmem:[#allocation2 + $0x1c] sm:$0xf]
    %v40 = vld [vmem:[#allocation2 + $0x20] sm:$0xf]
    %v41 = vld [vmem:[#allocation2 + $0x24] sm:$0xf]
    %v42 = vld [vmem:[#allocation2 + $0x28] sm:$0xf]
    %v43 = vld [vmem:[#allocation2 + $0x2c] sm:$0xf]
    %v44 = vld [vmem:[#allocation2 + $0x30] sm:$0xf]
    %v45 = vld [vmem:[#allocation2 + $0x34] sm:$0xf]
    %v46 = vld [vmem:[#allocation2 + $0x38] sm:$0xf]
    %v47 = vld [vmem:[#allocation2 + $0x3c] sm:$0xf]
    %v48 = vld [vmem:[#allocation2 + $0x40] sm:$0xf]
    %v49 = vld [vmem:[#allocation2 + $0x44] sm:$0xf]
    %v50 = vld [vmem:[#allocation2 + $0x48] sm:$0xf]
    %v51 = vld [vmem:[#allocation2 + $0x4c] sm:$0xf]
    %v52 = vld [vmem:[#allocation2 + $0x50] sm:$0xf]
    %v53 = vld [vmem:[#allocation2 + $0x54] sm:$0xf]
    %v54 = vld [vmem:[#allocation2 + $0x58] sm:$0xf]
    %v55 = vld [vmem:[#allocation2 + $0x5c] sm:$0xf]
    %v56 = vld [vmem:[#allocation2 + $0x60] sm:$0xf]
    %v57 = vld [vmem:[#allocation2 + $0x64] sm:$0xf]
    %v58 = vld [vmem:[#allocation2 + $0x68] sm:$0xf]
    %v59 = vld [vmem:[#allocation2 + $0x6c] sm:$0xf]
    %v60 = vld [vmem:[#allocation2 + $0x70] sm:$0xf]
    %v61 = vld [vmem:[#allocation2 + $0x74] sm:$0xf]
    %v62 = vld [vmem:[#allocation2 + $0x78] sm:$0xf]
    %v63 = vld [vmem:[#allocation2 + $0x7c] sm:$0xf]
    %v64 = vld [vmem:[#allocation2 + $0x80] sm:$0xf]
    %v65 = vld [vmem:[%s2] sm:$0x1]
    %v66 = vld [vmem:[%s2 + $0x1] sm:$0x1]
    %v67 = vld [vmem:[%s2 + $0x2] sm:$0x1]
    %v68 = vlaneseq
    %v69 = vshrl.u32 %v68, 7
    %v70 = vsub.s32 0, %v69
    %v71 = vrot.slane %v65, %v70
    %vm72 = vcmask 23552
    %v74 = vsel %vm72, %v31, 0
    %vm76 = vcmask 1040384
    %vm77 = vcmask 1041408
    %v78 = vsel %vm76, 4294967295, 65535
    %v79 = vsel %vm77, %v78, 0
    %v81 = vand.u32 %v32, %v79
    %83 = vmatprep.subr.bf16.mxu0 0
    %84 = vmatpush1.bf16.msra.mxu0 %v81
    %85 = vmatprep.subr.bf16.mxu0 0
    %86 = vmatpush1.bf16.msra.mxu0 0
    %87 = vmatprep.subr.bf16.mxu0 0
    %88 = vmatpush1.bf16.msra.mxu0 0
    %89 = vmatprep.subr.bf16.mxu0 0
    %90 = vmatpush1.bf16.msra.mxu0 0
    %91 = vmatprep.subr.bf16.mxu0 0
    %92 = vmatpush1.bf16.msra.mxu0 0
    %93 = vmatprep.subr.bf16.mxu0 0
    %94 = vmatpush1.bf16.msra.mxu0 0
    %95 = vmatprep.subr.bf16.mxu0 0
    %96 = vmatpush1.bf16.msra.mxu0 0
    %97 = vmatprep.subr.bf16.mxu0 0
    %98 = vmatpush1.bf16.msra.mxu0 0
    %99 = vmatprep.subr.bf16.mxu0 0
    %100 = vmatpush1.bf16.msra.mxu0 0
    %101 = vmatprep.subr.bf16.mxu0 0
    %102 = vmatpush1.bf16.msra.mxu0 0
    %103 = vmatprep.subr.bf16.mxu0 0
    %104 = vmatpush1.bf16.msra.mxu0 0
    %105 = vmatprep.subr.bf16.mxu0 0
    %106 = vmatpush1.bf16.msra.mxu0 0
    %107 = vmatprep.subr.bf16.mxu0 0
    %108 = vmatpush1.bf16.msra.mxu0 0
    %109 = vmatprep.subr.bf16.mxu0 0
    %110 = vmatpush1.bf16.msra.mxu0 0
    %111 = vmatprep.subr.bf16.mxu0 0
    %112 = vmatpush1.bf16.msra.mxu0 0
    %113 = vmatprep.subr.bf16.mxu0 0
    %114 = vmatpush1.bf16.msra.mxu0 0
    %115 = vmatprep.mubr.bf16.mxu0 0
    %116 = vmatmul.mubr.bf16.gmra.mrb[0].mxu0 %v74
    %v117 = vpop.f32.mrb[0].mxu0
    %v118 = vadd.f32 %v71, %v117
    %v119 = vpop.f32.mrb[0].mxu0
    %v120 = vpop.f32.mrb[0].mxu0
    %v121 = vpop.f32.mrb[0].mxu0
    %122 = vdwg.mxu0
    %v123 = vmax.f32 %v118, 0.0
    %v124 = vpack.c.bf16 %v123, %v123
    %v125 = vlaneseq
    %v126 = vshrl.u32 %v125, 7
    %v127 = vsub.s32 0, %v126
    %v128 = vrot.slane %v66, %v127
    %v145 = vunpack.c.l.b16 %v33
    %v146 = vunpack.c.l.b16 %v34
    %v147 = vunpack.c.l.b16 %v35
    %v148 = vunpack.c.l.b16 %v36
    %v149 = vunpack.c.l.b16 %v37
    %v150 = vunpack.c.l.b16 %v38
    %v151 = vunpack.c.l.b16 %v39
    %v152 = vunpack.c.l.b16 %v40
    %v153 = vunpack.c.l.b16 %v41
    %v154 = vunpack.c.l.b16 %v42
    %v155 = vunpack.c.l.b16 %v43
    %v156 = vunpack.c.l.b16 %v44
    %v157 = vunpack.c.l.b16 %v45
    %v158 = vunpack.c.l.b16 %v46
    %v159 = vunpack.c.l.b16 %v47
    %v160 = vunpack.c.l.b16 %v48
    %v161 = vpack.c.b16 %v146, %v145
    %v162 = vpack.c.b16 %v148, %v147
    %v163 = vpack.c.b16 %v150, %v149
    %v164 = vpack.c.b16 %v152, %v151
    %v165 = vpack.c.b16 %v154, %v153
    %v166 = vpack.c.b16 %v156, %v155
    %v167 = vpack.c.b16 %v158, %v157
    %v168 = vpack.c.b16 %v160, %v159
    %177 = vmatprep.subr.bf16.mxu0 0
    %178 = vmatpush1.bf16.msra.mxu0 %v161
    %179 = vmatprep.subr.bf16.mxu0 0
    %180 = vmatpush1.bf16.msra.mxu0 %v162
    %181 = vmatprep.subr.bf16.mxu0 0
    %182 = vmatpush1.bf16.msra.mxu0 %v163
    %183 = vmatprep.subr.bf16.mxu0 0
    %184 = vmatpush1.bf16.msra.mxu0 %v164
    %185 = vmatprep.subr.bf16.mxu0 0
    %186 = vmatpush1.bf16.msra.mxu0 %v165
    %187 = vmatprep.subr.bf16.mxu0 0
    %188 = vmatpush1.bf16.msra.mxu0 %v166
    %189 = vmatprep.subr.bf16.mxu0 0
    %190 = vmatpush1.bf16.msra.mxu0 %v167
    %191 = vmatprep.subr.bf16.mxu0 0
    %192 = vmatpush1.bf16.msra.mxu0 %v168
    %193 = vmatprep.subr.bf16.mxu0 0
    %194 = vmatpush1.bf16.msra.mxu0 0
    %195 = vmatprep.subr.bf16.mxu0 0
    %196 = vmatpush1.bf16.msra.mxu0 0
    %197 = vmatprep.subr.bf16.mxu0 0
    %198 = vmatpush1.bf16.msra.mxu0 0
    %199 = vmatprep.subr.bf16.mxu0 0
    %200 = vmatpush1.bf16.msra.mxu0 0
    %201 = vmatprep.subr.bf16.mxu0 0
    %202 = vmatpush1.bf16.msra.mxu0 0
    %203 = vmatprep.subr.bf16.mxu0 0
    %204 = vmatpush1.bf16.msra.mxu0 0
    %205 = vmatprep.subr.bf16.mxu0 0
    %206 = vmatpush1.bf16.msra.mxu0 0
    %207 = vmatprep.subr.bf16.mxu0 0
    %208 = vmatpush1.bf16.msra.mxu0 0
    %209 = vmatprep.mubr.bf16.mxu0 0
    %210 = vmatmul.mubr.bf16.gmra.mrb[0].mxu0 %v124
    %v211 = vpop.f32.mrb[0].mxu0
    %v212 = vadd.f32 %v128, %v211
    %v213 = vpop.f32.mrb[0].mxu0
    %v214 = vpop.f32.mrb[0].mxu0
    %v215 = vpop.f32.mrb[0].mxu0
    %216 = vdwg.mxu0
    %v217 = vmax.f32 %v212, 0.0
    %v218 = vpack.c.bf16 %v217, %v217
    %v219 = vlaneseq
    %v220 = vshrl.u32 %v219, 7
    %v221 = vsub.s32 0, %v220
    %v222 = vrot.slane %v67, %v221
    %v239 = vunpack.c.l.b16 %v49
    %v240 = vunpack.c.l.b16 %v50
    %v241 = vunpack.c.l.b16 %v51
    %v242 = vunpack.c.l.b16 %v52
    %v243 = vunpack.c.l.b16 %v53
    %v244 = vunpack.c.l.b16 %v54
    %v245 = vunpack.c.l.b16 %v55
    %v246 = vunpack.c.l.b16 %v56
    %v247 = vunpack.c.l.b16 %v57
    %v248 = vunpack.c.l.b16 %v58
    %v249 = vunpack.c.l.b16 %v59
    %v250 = vunpack.c.l.b16 %v60
    %v251 = vunpack.c.l.b16 %v61
    %v252 = vunpack.c.l.b16 %v62
    %v253 = vunpack.c.l.b16 %v63
    %v254 = vunpack.c.l.b16 %v64
    %v255 = vpack.c.b16 %v240, %v239
    %v256 = vpack.c.b16 %v242, %v241
    %v257 = vpack.c.b16 %v244, %v243
    %v258 = vpack.c.b16 %v246, %v245
    %v259 = vpack.c.b16 %v248, %v247
    %v260 = vpack.c.b16 %v250, %v249
    %v261 = vpack.c.b16 %v252, %v251
    %v262 = vpack.c.b16 %v254, %v253
    %271 = vmatprep.subr.bf16.mxu0 0
    %272 = vmatpush1.bf16.msra.mxu0 %v255
    %273 = vmatprep.subr.bf16.mxu0 0
    %274 = vmatpush1.bf16.msra.mxu0 %v256
    %275 = vmatprep.subr.bf16.mxu0 0
    %276 = vmatpush1.bf16.msra.mxu0 %v257
    %277 = vmatprep.subr.bf16.mxu0 0
    %278 = vmatpush1.bf16.msra.mxu0 %v258
    %279 = vmatprep.subr.bf16.mxu0 0
    %280 = vmatpush1.bf16.msra.mxu0 %v259
    %281 = vmatprep.subr.bf16.mxu0 0
    %282 = vmatpush1.bf16.msra.mxu0 %v260
    %283 = vmatprep.subr.bf16.mxu0 0
    %284 = vmatpush1.bf16.msra.mxu0 %v261
    %285 = vmatprep.subr.bf16.mxu0 0
    %286 = vmatpush1.bf16.msra.mxu0 %v262
    %287 = vmatprep.subr.bf16.mxu0 0
    %288 = vmatpush1.bf16.msra.mxu0 0
    %289 = vmatprep.subr.bf16.mxu0 0
    %290 = vmatpush1.bf16.msra.mxu0 0
    %291 = vmatprep.subr.bf16.mxu0 0
    %292 = vmatpush1.bf16.msra.mxu0 0
    %293 = vmatprep.subr.bf16.mxu0 0
    %294 = vmatpush1.bf16.msra.mxu0 0
    %295 = vmatprep.subr.bf16.mxu0 0
    %296 = vmatpush1.bf16.msra.mxu0 0
    %297 = vmatprep.subr.bf16.mxu0 0
    %298 = vmatpush1.bf16.msra.mxu0 0
    %299 = vmatprep.subr.bf16.mxu0 0
    %300 = vmatpush1.bf16.msra.mxu0 0
    %301 = vmatprep.subr.bf16.mxu0 0
    %302 = vmatpush1.bf16.msra.mxu0 0
    %303 = vmatprep.mubr.bf16.mxu0 0
    %304 = vmatmul.mubr.bf16.gmra.mrb[0].mxu0 %v218
    %v305 = vpop.f32.mrb[0].mxu0
    %v306 = vadd.f32 %v222, %v305
    %v307 = vpop.f32.mrb[0].mxu0
    %v308 = vpop.f32.mrb[0].mxu0
    %v309 = vpop.f32.mrb[0].mxu0
    %310 = vdwg.mxu0
    %vm311 = vcmask 64512
    %312 = vst.msk [vmem:[#allocation5] sm:$0xff] %vm311, %v306
    // Predicated region
    $region18: #{tpu_custom_call.1} parent=1 // pred_check
      _
    $region19: #{tpu_custom_call.1} parent=1 // pred_check_branch
      %314 = sbr.rel (0) target = $region21
    $region20: #{tpu_custom_call.1} parent=1 // pred_region
      %s316 = ssub.s32 128, 128
      %317 = vsyncadd [#allocation4], %s316
      %s319 = sshll.u32 [#allocation5], 4
      %s320 = int_to_ptr.vmem [resolvable:$true] %s319
      %322 = dma.vmem_to_hbm [thread:$0]  %s320, 128, %s3, [#allocation4]
    $region21: #{tpu_custom_call.1} parent=1 // pred_fallthru
      _
    // Predicated region
    $region22: #{tpu_custom_call.1} parent=1 // pred_check
      _
    $region23: #{tpu_custom_call.1} parent=1 // pred_check_branch
      %324 = sbr.rel (0) target = $region25
    $region24: #{tpu_custom_call.1} parent=1 // pred_region
      %325 = dma.done [#allocation4], 128
    $region25: #{tpu_custom_call.1} parent=1 // pred_fallthru
      _
    %326 = vsyncpa [#allocation3], 1
    %327 = vsyncpa [#allocation4], 1

</llo_original>
